<compile_context>
chip_gen: v6e
topology: v6e:2x2x1
jax: 0.10.0
libtpu: 0.0.40
codegen_flags: <defaults>
</compile_context>

<pallas_src>
import functools

import jax
import jax.numpy as jnp
from jax.experimental import pallas as pl
from jax.experimental.pallas import tpu as pltpu

LANE = 128
SUBLANE = 8


def _round_up(n, m):
    return ((n + m - 1) // m) * m


def _num_tensorcores():
    """Best-effort count of TensorCores a 'parallel' grid axis is sharded over."""
    try:
        kind = jax.devices()[0].device_kind.lower()
    except Exception:
        return 1
    for tag in ("v7", "v5p", "v4"):
        if tag in kind:
            return 2
    return 1


def _mlp_kernel(x_ref, w1_ref, b1_ref, w2_ref, b2_ref, o_ref):
    # f32 -> bf16 cast on the VPU, right before the MXU (no wrapper pass over x).
    x = x_ref[...].astype(w1_ref.dtype)
    # Layer 1: Linear (MXU, f32 accumulation) + bias (f32) + Tanh (EUP, f32).
    h = jnp.dot(x, w1_ref[...], preferred_element_type=jnp.float32)
    h = jnp.tanh(h + b1_ref[...])
    # Layer 2: Linear (MXU, f32 accumulation) + bias (f32).
    q = jnp.dot(h.astype(w2_ref.dtype), w2_ref[...],
                preferred_element_type=jnp.float32)
    # Lane-dense (out_pad = multiple of 128) unmasked store, bf16 writeback.
    o_ref[...] = (q + b2_ref[...]).astype(o_ref.dtype)


def pack_params(w1, b1, w2, b2, compute_dtype=jnp.bfloat16):
    """One-time packing (outside the per-forward hot path).

    w1: [in_features, hidden]   b1: [hidden]
    w2: [hidden, num_actions]   b2: [num_actions]

    * hidden is zero-padded to a multiple of 128 (lane-dense intermediates)
    * num_actions is zero-padded to a multiple of 128 (lane-dense output)
    * weights pre-cast once to the MXU operand dtype; biases stay f32.
    """
    in_features, hidden = w1.shape
    num_actions = w2.shape[1]
    in_pad = _round_up(in_features, 16)          # sublane packing for bf16 W1
    hidden_pad = _round_up(hidden, LANE)
    out_pad = _round_up(num_actions, LANE)

    w1p = jnp.pad(w1, ((0, in_pad - in_features), (0, hidden_pad - hidden)))
    b1p = jnp.pad(b1, (0, hidden_pad - hidden)).reshape(1, hidden_pad)
    w2p = jnp.pad(w2, ((0, hidden_pad - hidden), (0, out_pad - num_actions)))
    b2p = jnp.pad(b2, (0, out_pad - num_actions)).reshape(1, out_pad)

    return dict(
        w1=w1p.astype(compute_dtype),
        b1=b1p.astype(jnp.float32),
        w2=w2p.astype(compute_dtype),
        b2=b2p.astype(jnp.float32),
        in_features=in_features,
        num_actions=num_actions,
    )


@functools.partial(
    jax.jit,
    static_argnames=("in_features", "num_actions", "tile_b_max", "n_cores"))
def _forward_impl(x, w1, b1, w2, b2, *, in_features, num_actions,
                  tile_b_max, n_cores):
    in_pad, hidden_pad = w1.shape
    out_pad = w2.shape[1]
    B = x.shape[0]

    # Batch tiling: one grid step on 1-TC chips; exact n_cores-way split on
    # multi-TC chips (both cores busy, no wasted padded rows), capped by a
    # VMEM budget.
    n_split = n_cores if B >= 2 * SUBLANE else 1
    tile_b = _round_up(-(-B // n_split), SUBLANE)
    tile_b = min(tile_b, tile_b_max)
    grid_b = pl.cdiv(B, tile_b)
    b_pad = grid_b * tile_b

    xp = x
    if b_pad != B or in_pad != in_features:
        # Zero-padding only (fused under jit with the pallas_call); x stays f32.
        xp = jnp.pad(x, ((0, b_pad - B), (0, in_pad - in_features)))

    flops = 2 * b_pad * (in_pad * hidden_pad + hidden_pad * out_pad)
    bytes_accessed = (xp.size * 4 + w1.size * 2 + b1.size * 4
                      + w2.size * 2 + b2.size * 4 + b_pad * out_pad * 2)

    q_pad = pl.pallas_call(
        _mlp_kernel,
        out_shape=jax.ShapeDtypeStruct((b_pad, out_pad), jnp.bfloat16),
        grid=(grid_b,),
        in_specs=[
            pl.BlockSpec((tile_b, in_pad), lambda i: (i, 0)),
            pl.BlockSpec(w1.shape, lambda i: (0, 0)),   # resident across grid
            pl.BlockSpec(b1.shape, lambda i: (0, 0)),   # resident across grid
            pl.BlockSpec(w2.shape, lambda i: (0, 0)),   # resident across grid
            pl.BlockSpec(b2.shape, lambda i: (0, 0)),   # resident across grid
        ],
        out_specs=pl.BlockSpec((tile_b, out_pad), lambda i: (i, 0)),
        compiler_params=pltpu.CompilerParams(
            dimension_semantics=("parallel",),
            vmem_limit_bytes=32 << 20),
        cost_estimate=pl.CostEstimate(
            flops=flops,
            transcendentals=b_pad * hidden_pad,
            bytes_accessed=bytes_accessed),
    )(xp, w1, b1, w2, b2)

    # Padded rows/lanes contain garbage -> always slice; cast back to f32.
    return q_pad[:B, :num_actions].astype(jnp.float32)


def network_forward(x, params, *, tile_b_max=4096):
    """Pallas equivalent of Network.forward: tanh(x @ W1 + b1) @ W2 + b2.

    x: [B, in_features] float32 -> [B, num_actions] float32.
    """
    return _forward_impl(
        x, params["w1"], params["b1"], params["w2"], params["b2"],
        in_features=params["in_features"], num_actions=params["num_actions"],
        tile_b_max=tile_b_max, n_cores=_num_tensorcores())


@functools.partial(
    jax.jit, static_argnames=("in_features", "num_actions", "n_cores"))
def _act_impl(obs, w1, b1, w2, b2, *, in_features, num_actions, n_cores):
    q = _forward_impl(obs.reshape(1, -1), w1, b1, w2, b2,
                      in_features=in_features, num_actions=num_actions,
                      tile_b_max=4096, n_cores=n_cores)
    return jnp.argmax(q[0]).astype(jnp.int32)


def act(obs, params):
    """Network.act equivalent: greedy action.

    Returns a device int32 scalar (convert with int(...) only when the host
    actually needs the value, to avoid a sync per environment step).
    """
    return _act_impl(
        obs, params["w1"], params["b1"], params["w2"], params["b2"],
        in_features=params["in_features"], num_actions=params["num_actions"],
        n_cores=_num_tensorcores())


if __name__ == "__main__":
    # Shapes consistent with the module:
    #   in_features = prod(env.get_state(0).shape) -> 32
    #   num_actions = len(env.actions)             -> 8
    B, IN_FEATURES, HIDDEN, NUM_ACTIONS = 2, 32, 64, 8

    key = jax.random.PRNGKey(0)
    kx, k1, k2, k3, k4 = jax.random.split(key, 5)
    lim1 = 1.0 / jnp.sqrt(IN_FEATURES)
    lim2 = 1.0 / jnp.sqrt(HIDDEN)
    x = jax.random.normal(kx, (B, IN_FEATURES), jnp.float32)
    w1 = jax.random.uniform(k1, (IN_FEATURES, HIDDEN), jnp.float32, -lim1, lim1)
    b1 = jax.random.uniform(k2, (HIDDEN,), jnp.float32, -lim1, lim1)
    w2 = jax.random.uniform(k3, (HIDDEN, NUM_ACTIONS), jnp.float32, -lim2, lim2)
    b2 = jax.random.uniform(k4, (NUM_ACTIONS,), jnp.float32, -lim2, lim2)

    params = pack_params(w1, b1, w2, b2, compute_dtype=jnp.bfloat16)

    # Reference: identical math in plain JAX — MXU operands rounded to bf16,
    # accumulation / biases / tanh in f32 (matching the kernel).
    rd = lambda a: a.astype(jnp.bfloat16).astype(jnp.float32)

    def reference(xs):
        h = jnp.tanh(rd(xs) @ rd(w1) + b1)
        return rd(h) @ rd(w2) + b2

    # Small online-action-selection batch (grid=(1,), tile_b=8).
    q = network_forward(x, params)
    jax.block_until_ready(q)
    assert q.shape == (B, NUM_ACTIONS)
    err = float(jnp.max(jnp.abs(q - reference(x))))
    assert jnp.allclose(q, reference(x), atol=2e-2), (
        f"mismatch vs reference (max abs err {err})")

    # Replay-buffer-sized batch: whole-batch single grid step on 1-TC chips,
    # exact 2-way split (tile_b=192) on 2-TC chips — no padded-row waste.
    xb = jax.random.normal(jax.random.PRNGKey(1), (384, IN_FEATURES), jnp.float32)
    qb = network_forward(xb, params)
    jax.block_until_ready(qb)
    assert qb.shape == (384, NUM_ACTIONS)
    assert jnp.allclose(qb, reference(xb), atol=2e-2), "mismatch on batched path"

    # `act` equivalent (fully jitted reshape -> kernel -> argmax, device scalar).
    action = act(x[0], params)
    jax.block_until_ready(action)
    assert int(action) == int(jnp.argmax(reference(x[0].reshape(1, -1))[0]))

    print("KERNEL_OK")
</pallas_src>

<mosaic_0001>
module attributes {stable_mosaic.version = 11 : i64} {
  func.func @_mlp_kernel(%arg0: i32, %arg1: memref<8x32xf32, #tpu.memory_space<vmem>>, %arg2: memref<32x128xbf16, #tpu.memory_space<vmem>>, %arg3: memref<1x128xf32, #tpu.memory_space<vmem>>, %arg4: memref<128x128xbf16, #tpu.memory_space<vmem>>, %arg5: memref<1x128xf32, #tpu.memory_space<vmem>>, %arg6: memref<8x128xbf16, #tpu.memory_space<vmem>>) attributes {dimension_semantics = [#tpu.dimension_semantics<parallel>], iteration_bounds = array<i64: 1>, scalar_prefetch = 0 : i64, scratch_operands = 0 : i64, tpu.core_type = #tpu.core_type<tc>, window_params = [{transform_indices = @transform_0, window_bounds = array<i64: 8, 32>}, {pipeline_mode = #tpu.pipeline_mode<synchronous>, transform_indices = @transform_1, window_bounds = array<i64: 32, 128>}, {pipeline_mode = #tpu.pipeline_mode<synchronous>, transform_indices = @transform_2, window_bounds = array<i64: 1, 128>}, {pipeline_mode = #tpu.pipeline_mode<synchronous>, transform_indices = @transform_3, window_bounds = array<i64: 128, 128>}, {pipeline_mode = #tpu.pipeline_mode<synchronous>, transform_indices = @transform_4, window_bounds = array<i64: 1, 128>}, {transform_indices = @transform_5, window_bounds = array<i64: 8, 128>}]} {
    %c0 = arith.constant 0 : index
    %c0_0 = arith.constant 0 : index
    %0 = vector.load %arg1[%c0, %c0_0] : memref<8x32xf32, #tpu.memory_space<vmem>>, vector<8x32xf32>
    %1 = arith.truncf %0 : vector<8x32xf32> to vector<8x32xbf16>
    %c0_1 = arith.constant 0 : index
    %c0_2 = arith.constant 0 : index
    %2 = vector.load %arg2[%c0_1, %c0_2] : memref<32x128xbf16, #tpu.memory_space<vmem>>, vector<32x128xbf16>
    %cst = arith.constant dense<0.000000e+00> : vector<8x128xf32>
    %3 = tpu.matmul %1, %2, %cst {dimension_numbers = #tpu.dot_dimension_numbers<[1], [0], [0], [1], [0, 0, 1, 1], [], []>} : vector<8x32xbf16>, vector<32x128xbf16>, vector<8x128xf32> -> vector<8x128xf32>
    %c0_3 = arith.constant 0 : index
    %c0_4 = arith.constant 0 : index
    %4 = vector.load %arg3[%c0_3, %c0_4] : memref<1x128xf32, #tpu.memory_space<vmem>>, vector<1x128xf32>
    %5 = vector.broadcast %4 : vector<1x128xf32> to vector<8x128xf32>
    %6 = arith.addf %3, %5 : vector<8x128xf32>
    %7 = math.tanh %6 : vector<8x128xf32>
    %8 = arith.truncf %7 : vector<8x128xf32> to vector<8x128xbf16>
    %c0_5 = arith.constant 0 : index
    %c0_6 = arith.constant 0 : index
    %9 = vector.load %arg4[%c0_5, %c0_6] : memref<128x128xbf16, #tpu.memory_space<vmem>>, vector<128x128xbf16>
    %cst_7 = arith.constant dense<0.000000e+00> : vector<8x128xf32>
    %10 = tpu.matmul %8, %9, %cst_7 {dimension_numbers = #tpu.dot_dimension_numbers<[1], [0], [0], [1], [0, 0, 1, 1], [], []>} : vector<8x128xbf16>, vector<128x128xbf16>, vector<8x128xf32> -> vector<8x128xf32>
    %c0_8 = arith.constant 0 : index
    %c0_9 = arith.constant 0 : index
    %11 = vector.load %arg5[%c0_8, %c0_9] : memref<1x128xf32, #tpu.memory_space<vmem>>, vector<1x128xf32>
    %12 = vector.broadcast %11 : vector<1x128xf32> to vector<8x128xf32>
    %13 = arith.addf %10, %12 : vector<8x128xf32>
    %14 = arith.truncf %13 : vector<8x128xf32> to vector<8x128xbf16>
    %c0_10 = arith.constant 0 : index
    %c0_11 = arith.constant 0 : index
    %15 = vector.load %arg6[%c0_10, %c0_11] : memref<8x128xbf16, #tpu.memory_space<vmem>>, vector<8x128xbf16>
    tpu.vector_store %arg6[%c0_10, %c0_11], %14 {strides = array<i32>} : memref<8x128xbf16, #tpu.memory_space<vmem>>, vector<8x128xbf16>,
    return
  }
  func.func @transform_0(%arg0: i32) -> (i32, i32) {
    %c0_i32 = arith.constant 0 : i32
    %c0_i32_0 = arith.constant 0 : i32
    return %arg0, %c0_i32 : i32, i32
  }
  func.func @transform_1(%arg0: i32) -> (i32, i32) {
    %c0_i32 = arith.constant 0 : i32
    %c0_i32_0 = arith.constant 0 : i32
    %c0_i32_1 = arith.constant 0 : i32
    return %c0_i32, %c0_i32_0 : i32, i32
  }
  func.func @transform_2(%arg0: i32) -> (i32, i32) {
    %c0_i32 = arith.constant 0 : i32
    %c0_i32_0 = arith.constant 0 : i32
    %c0_i32_1 = arith.constant 0 : i32
    return %c0_i32, %c0_i32_0 : i32, i32
  }
  func.func @transform_3(%arg0: i32) -> (i32, i32) {
    %c0_i32 = arith.constant 0 : i32
    %c0_i32_0 = arith.constant 0 : i32
    %c0_i32_1 = arith.constant 0 : i32
    return %c0_i32, %c0_i32_0 : i32, i32
  }
  func.func @transform_4(%arg0: i32) -> (i32, i32) {
    %c0_i32 = arith.constant 0 : i32
    %c0_i32_0 = arith.constant 0 : i32
    %c0_i32_1 = arith.constant 0 : i32
    return %c0_i32, %c0_i32_0 : i32, i32
  }
  func.func @transform_5(%arg0: i32) -> (i32, i32) {
    %c0_i32 = arith.constant 0 : i32
    %c0_i32_0 = arith.constant 0 : i32
    return %arg0, %c0_i32 : i32, i32
  }
}

</mosaic_0001>

<llo_original>
// kernel: _forward_impl.1
$region0: #{_forward_impl.1}
  #allocation0 [shape = 'u32[]', space=smem, size = 0x4, offset = 0x4, fixed_abs, tag = 'smem constant byte address 0x4 - core index']
  #allocation1 [shape = 'u32[144,128]{1,0:T(1,128)}', space=vmem, size = 0x12000, scoped, tag = 'internal scratch']
  %s0 = inlined_call_operand.vmem [shape: f32[8,32], index: 0, kind: input, shape index: {}]
  %s1 = inlined_call_operand.hbm [shape: bf16[32,128], index: 1, kind: input, shape index: {}]
  %s2 = inlined_call_operand.vmem [shape: f32[1,128], index: 2, kind: input, shape index: {}]
  %s3 = inlined_call_operand.hbm [shape: bf16[128,128], index: 3, kind: input, shape index: {}]
  %s4 = inlined_call_operand.vmem [shape: f32[1,128], index: 4, kind: input, shape index: {}]
  %s5 = inlined_call_operand.vmem [shape: bf16[8,128], index: 5, kind: output, shape index: {}]
  %s6 = sld [smem:[#allocation0]]
  $region38: #{_forward_impl.1} parent=0
    _
  %s8 = ssub.s32 1, %s6
  %s9 = scalar_select 0, %s8, %s6
  $region1: #{_forward_impl.1} parent=0
    #allocation2 [shape = 'u8[8192]{0}', space=vmem, size = 0x2000, scoped, tag = 'input window, operand 1, single buffered']
    #allocation3 [shape = 's32[1]{0}', space=sflag, size = 0x4, scoped, tag = 'scoped memory for _forward_impl.1']
    #allocation4 [shape = 'u8[32768]{0}', space=vmem, size = 0x8000, scoped, tag = 'input window, operand 3, single buffered']
    #allocation5 [shape = 's32[1]{0}', space=sflag, size = 0x4, scoped, tag = 'scoped memory for _forward_impl.1']
    %10 = vsyncpa [#allocation3], 0
    %11 = vsyncpa [#allocation5], 0
    // Predicated region
    $region2: #{_forward_impl.1} parent=1 // pred_check
      _
    $region3: #{_forward_impl.1} parent=1 // pred_check_branch
      %13 = sbr.rel (0) target = $region5
    $region4: #{_forward_impl.1} parent=1 // pred_region
      _
    $region5: #{_forward_impl.1} parent=1 // pred_fallthru
      _
    // Predicated region
    $region6: #{_forward_impl.1} parent=1 // pred_check
      _
    $region7: #{_forward_impl.1} parent=1 // pred_check_branch
      %15 = sbr.rel (0) target = $region9
    $region8: #{_forward_impl.1} parent=1 // pred_region
      %s17 = ssub.s32 256, 256
      %18 = vsyncadd [#allocation3], %s17
      %s19 = sshll.u32 [#allocation2], 4
      %s20 = int_to_ptr.vmem [resolvable:$true] %s19
      %25 = dma.hbm_to_vmem [thread:$0]  %s1, 256, %s20, [#allocation3], 64, 64, 4
    $region9: #{_forward_impl.1} parent=1 // pred_fallthru
      _
    // Predicated region
    $region10: #{_forward_impl.1} parent=1 // pred_check
      _
    $region11: #{_forward_impl.1} parent=1 // pred_check_branch
      %27 = sbr.rel (0) target = $region13
    $region12: #{_forward_impl.1} parent=1 // pred_region
      _
    $region13: #{_forward_impl.1} parent=1 // pred_fallthru
      _
    // Predicated region
    $region14: #{_forward_impl.1} parent=1 // pred_check
      _
    $region15: #{_forward_impl.1} parent=1 // pred_check_branch
      %29 = sbr.rel (0) target = $region17
    $region16: #{_forward_impl.1} parent=1 // pred_region
      %s31 = ssub.s32 1024, 1024
      %32 = vsyncadd [#allocation5], %s31
      %s33 = sshll.u32 [#allocation4], 4
      %s34 = int_to_ptr.vmem [resolvable:$true] %s33
      %39 = dma.hbm_to_vmem [thread:$0]  %s3, 1024, %s34, [#allocation5], 64, 64, 4
    $region17: #{_forward_impl.1} parent=1 // pred_fallthru
      _
    // Predicated region
    $region18: #{_forward_impl.1} parent=1 // pred_check
      _
    $region19: #{_forward_impl.1} parent=1 // pred_check_branch
      %41 = sbr.rel (0) target = $region21
    $region20: #{_forward_impl.1} parent=1 // pred_region
      _
    $region21: #{_forward_impl.1} parent=1 // pred_fallthru
      _
    // Predicated region
    $region22: #{_forward_impl.1} parent=1 // pred_check
      _
    $region23: #{_forward_impl.1} parent=1 // pred_check_branch
      %43 = sbr.rel (0) target = $region25
    $region24: #{_forward_impl.1} parent=1 // pred_region
      %44 = dma.done [#allocation3], 256
    $region25: #{_forward_impl.1} parent=1 // pred_fallthru
      _
    // Predicated region
    $region26: #{_forward_impl.1} parent=1 // pred_check
      _
    $region27: #{_forward_impl.1} parent=1 // pred_check_branch
      %46 = sbr.rel (0) target = $region29
    $region28: #{_forward_impl.1} parent=1 // pred_region
      %47 = dma.done [#allocation5], 1024
    $region29: #{_forward_impl.1} parent=1 // pred_fallthru
      _
    %v49 = vld [vmem:[%s0] sm:$0xff]
    %v50 = vpack.c.bf16 %v49, %v49
    %v51 = vld [vmem:[#allocation2] sm:$0xf]
    %v52 = vld [vmem:[#allocation2 + $0x4] sm:$0xf]
    %v53 = vld [vmem:[#allocation2 + $0x8] sm:$0xf]
    %v54 = vld [vmem:[#allocation2 + $0xc] sm:$0xf]
    %v55 = vld [vmem:[%s2] sm:$0x1]
    %v57 = vlaneseq
    %v58 = vshrl.u32 %v57, 7
    %v59 = vsub.s32 0, %v58
    %v60 = vrot.slane %v55, %v59
    %v66 = vunpack.c.l.b16 %v51
    %v67 = vunpack.c.l.b16 %v52
    %v68 = vunpack.c.l.b16 %v53
    %v69 = vunpack.c.l.b16 %v54
    %v70 = vpack.c.b16 %v67, %v66
    %v71 = vpack.c.b16 %v69, %v68
    %vm74 = vcmask 261120
    %v76 = vsel %vm74, %v50, 0
    %78 = vmatprep.subr.bf16.mxu0 0
    %79 = vmatpush1.bf16.msra.mxu0 0
    %80 = vmatprep.subr.bf16.mxu0 0
    %81 = vmatpush1.bf16.msra.mxu0 0
    %82 = vmatprep.subr.bf16.mxu0 0
    %83 = vmatpush1.bf16.msra.mxu0 0
    %84 = vmatprep.subr.bf16.mxu0 0
    %85 = vmatpush1.bf16.msra.mxu0 0
    %86 = vmatprep.subr.bf16.mxu0 0
    %87 = vmatpush1.bf16.msra.mxu0 0
    %88 = vmatprep.subr.bf16.mxu0 0
    %89 = vmatpush1.bf16.msra.mxu0 0
    %90 = vmatprep.subr.bf16.mxu0 0
    %91 = vmatpush1.bf16.msra.mxu0 %v71
    %92 = vmatprep.subr.bf16.mxu0 0
    %93 = vmatpush1.bf16.msra.mxu0 %v70
    %94 = vmatprep.subr.bf16.mxu0 0
    %95 = vmatpush2.bf16.msra.mxu0 0
    %96 = vmatprep.subr.bf16.mxu0 0
    %97 = vmatpush2.bf16.msra.mxu0 0
    %98 = vmatprep.subr.bf16.mxu0 0
    %99 = vmatpush2.bf16.msra.mxu0 0
    %100 = vmatprep.subr.bf16.mxu0 0
    %101 = vmatpush2.bf16.msra.mxu0 0
    %102 = vmatprep.subr.bf16.mxu0 0
    %103 = vmatpush2.bf16.msra.mxu0 0
    %104 = vmatprep.subr.bf16.mxu0 0
    %105 = vmatpush2.bf16.msra.mxu0 0
    %106 = vmatprep.subr.bf16.mxu0 0
    %107 = vmatpush2.bf16.msra.mxu0 0
    %108 = vmatprep.subr.bf16.mxu0 0
    %109 = vmatpush2.bf16.msra.mxu0 0
    %110 = vmatprep.mubr.bf16.mxu0 0
    %111 = vmatmul.mubr.bf16.gmra.mxu0 %v76
    %v112 = vpop.f32.mrf.mxu0
    %v113 = vadd.f32 %v60, %v112
    %v114 = vpop.f32.mrf.mxu0
    %v115 = vpop.f32.mrf.mxu0
    %v116 = vpop.f32.mrf.mxu0
    %117 = vdwg.mxu0
    %v118 = vtanh.pop %v113
    %v119 = vpack.c.bf16 %v118, %v118
    %v120 = vld [vmem:[#allocation4] sm:$0xf]
    %v121 = vld [vmem:[#allocation4 + $0x4] sm:$0xf]
    %v122 = vld [vmem:[#allocation4 + $0x8] sm:$0xf]
    %v123 = vld [vmem:[#allocation4 + $0xc] sm:$0xf]
    %v124 = vld [vmem:[#allocation4 + $0x10] sm:$0xf]
    %v125 = vld [vmem:[#allocation4 + $0x14] sm:$0xf]
    %v126 = vld [vmem:[#allocation4 + $0x18] sm:$0xf]
    %v127 = vld [vmem:[#allocation4 + $0x1c] sm:$0xf]
    %v128 = vld [vmem:[#allocation4 + $0x20] sm:$0xf]
    %v129 = vld [vmem:[#allocation4 + $0x24] sm:$0xf]
    %v130 = vld [vmem:[#allocation4 + $0x28] sm:$0xf]
    %v131 = vld [vmem:[#allocation4 + $0x2c] sm:$0xf]
    %v132 = vld [vmem:[#allocation4 + $0x30] sm:$0xf]
    %v133 = vld [vmem:[#allocation4 + $0x34] sm:$0xf]
    %v134 = vld [vmem:[#allocation4 + $0x38] sm:$0xf]
    %v135 = vld [vmem:[#allocation4 + $0x3c] sm:$0xf]
    %v136 = vld [vmem:[%s4] sm:$0x1]
    %v138 = vlaneseq
    %v139 = vshrl.u32 %v138, 7
    %v140 = vsub.s32 0, %v139
    %v141 = vrot.slane %v136, %v140
    %v159 = vunpack.c.l.b16 %v120
    %v160 = vunpack.c.l.b16 %v121
    %v161 = vunpack.c.l.b16 %v122
    %v162 = vunpack.c.l.b16 %v123
    %v163 = vunpack.c.l.b16 %v124
    %v164 = vunpack.c.l.b16 %v125
    %v165 = vunpack.c.l.b16 %v126
    %v166 = vunpack.c.l.b16 %v127
    %v167 = vunpack.c.l.b16 %v128
    %v168 = vunpack.c.l.b16 %v129
    %v169 = vunpack.c.l.b16 %v130
    %v170 = vunpack.c.l.b16 %v131
    %v171 = vunpack.c.l.b16 %v132
    %v172 = vunpack.c.l.b16 %v133
    %v173 = vunpack.c.l.b16 %v134
    %v174 = vunpack.c.l.b16 %v135
    %v175 = vpack.c.b16 %v160, %v159
    %v176 = vpack.c.b16 %v162, %v161
    %v177 = vpack.c.b16 %v164, %v163
    %v178 = vpack.c.b16 %v166, %v165
    %v179 = vpack.c.b16 %v168, %v167
    %v180 = vpack.c.b16 %v170, %v169
    %v181 = vpack.c.b16 %v172, %v171
    %v182 = vpack.c.b16 %v174, %v173
    %191 = vmatprep.subr.bf16.mxu0 0
    %192 = vmatpush1.bf16.msra.mxu0 %v182
    %193 = vmatprep.subr.bf16.mxu0 0
    %194 = vmatpush1.bf16.msra.mxu0 %v181
    %195 = vmatprep.subr.bf16.mxu0 0
    %196 = vmatpush1.bf16.msra.mxu0 %v180
    %197 = vmatprep.subr.bf16.mxu0 0
    %198 = vmatpush1.bf16.msra.mxu0 %v179
    %199 = vmatprep.subr.bf16.mxu0 0
    %200 = vmatpush1.bf16.msra.mxu0 %v178
    %201 = vmatprep.subr.bf16.mxu0 0
    %202 = vmatpush1.bf16.msra.mxu0 %v177
    %203 = vmatprep.subr.bf16.mxu0 0
    %204 = vmatpush1.bf16.msra.mxu0 %v176
    %205 = vmatprep.subr.bf16.mxu0 0
    %206 = vmatpush1.bf16.msra.mxu0 %v175
    %207 = vmatprep.subr.bf16.mxu0 0
    %208 = vmatpush2.bf16.msra.mxu0 0
    %209 = vmatprep.subr.bf16.mxu0 0
    %210 = vmatpush2.bf16.msra.mxu0 0
    %211 = vmatprep.subr.bf16.mxu0 0
    %212 = vmatpush2.bf16.msra.mxu0 0
    %213 = vmatprep.subr.bf16.mxu0 0
    %214 = vmatpush2.bf16.msra.mxu0 0
    %215 = vmatprep.subr.bf16.mxu0 0
    %216 = vmatpush2.bf16.msra.mxu0 0
    %217 = vmatprep.subr.bf16.mxu0 0
    %218 = vmatpush2.bf16.msra.mxu0 0
    %219 = vmatprep.subr.bf16.mxu0 0
    %220 = vmatpush2.bf16.msra.mxu0 0
    %221 = vmatprep.subr.bf16.mxu0 0
    %222 = vmatpush2.bf16.msra.mxu0 0
    %223 = vmatprep.mubr.bf16.mxu0 0
    %224 = vmatmul.mubr.bf16.gmra.mxu0 %v119
    %v225 = vpop.f32.mrf.mxu0
    %v226 = vadd.f32 %v141, %v225
    %v227 = vpop.f32.mrf.mxu0
    %v228 = vpop.f32.mrf.mxu0
    %v229 = vpop.f32.mrf.mxu0
    %230 = vdwg.mxu0
    %v231 = vpack.c.bf16 %v226, %v226
    %232 = vst [vmem:[%s5] sm:$0xf] %v231
    // Predicated region
    $region30: #{_forward_impl.1} parent=1 // pred_check
      _
    $region31: #{_forward_impl.1} parent=1 // pred_check_branch
      %234 = sbr.rel (0) target = $region33
    $region32: #{_forward_impl.1} parent=1 // pred_region
      _
    $region33: #{_forward_impl.1} parent=1 // pred_fallthru
      _
    // Predicated region
    $region34: #{_forward_impl.1} parent=1 // pred_check
      _
    $region35: #{_forward_impl.1} parent=1 // pred_check_branch
      %236 = sbr.rel (0) target = $region37
    $region36: #{_forward_impl.1} parent=1 // pred_region
      _
    $region37: #{_forward_impl.1} parent=1 // pred_fallthru
      _
    %237 = vsyncpa [#allocation3], 1
    %238 = vsyncpa [#allocation5], 1

</llo_original>
